<compile_context>
chip_gen: v7x
topology: tpu7x:2x2x1
jax: 0.10.0
libtpu: 0.0.40
codegen_flags: <defaults>
</compile_context>

<pallas_src>
import functools
import math

import jax
import jax.numpy as jnp
from jax import lax
from jax.experimental import pallas as pl
from jax.experimental.pallas import tpu as pltpu


# -----------------------------------------------------------------------------
# Small helpers
# -----------------------------------------------------------------------------
def _round_up(x, m):
    return ((x + m - 1) // m) * m


def _cdiv(a, b):
    return -(-a // b)


def _vmem_limit_bytes():
    """Generation-aware scoped-VMEM request: ~48 MiB on v7x (64 MiB physical),
    64 MiB on v5e/v6e (128 MiB physical)."""
    try:
        cap = int(pltpu.get_tpu_info().vmem_capacity_bytes)
    except Exception:  # no TPU info available -> assume the smallest (v7x)
        cap = 64 * 1024 * 1024
    return min(64 * 1024 * 1024, (3 * cap) // 4)


def _choose_tiles(M, L, D, dout, kind, vmem_limit, tm_max=2048, min_steps=4):
    """Pick (tm, tn, reps).

    tm   : row tile, multiple of 8, sized for >= min_steps grid steps and VMEM.
    tn   : output-channel tile; == dout unless the resident weight is too big,
           then a multiple of 128 (second grid axis over dout).
    reps : tm // L when every row block starts at a sequence boundary (sin/cos
           PE computed once per sequence and tiled), else 0.
    """
    budget = (3 * vmem_limit) // 4  # headroom for compiler scratch

    def fits(tm, tn, single_w):
        x_b = 2 * tm * D * 4                              # double-buffered x tile
        o_b = 2 * tm * tn * 4                             # double-buffered out tile
        w_b = (1 if single_w else 2) * D * tn * 4         # weight tile
        rows = (1 if single_w else 2) * 3 * 8 * tn * 4    # (1,tn) rows pad to 8 sublanes
        return x_b + o_b + w_b + rows <= budget

    # Output-channel tile: full width unless the weight blows the budget even
    # at the minimum row tile.
    tn = dout
    if dout > 128 and not fits(8, tn, True):
        tn = (dout // 128) * 128
        while tn > 128 and not fits(8, tn, False):
            tn -= 128
        tn = max(tn, 128)
    single_w = tn == dout
    # TODO(synk): if even (tm=8, tn=128) does not fit (enormous D), add a K
    # (contraction) grid axis with an f32 VMEM accumulator.

    # Row tile: big enough to amortize per-step overhead, small enough to keep
    # >= min_steps grid steps (v7x: 2 TCs * double buffering) and fit VMEM.
    tm = min(tm_max, _round_up(max(_cdiv(M, min_steps), 8), 8))
    while tm > 8 and not fits(tm, tn, single_w):
        tm -= 8

    # sin/cos: align row blocks to sequence boundaries so PE is computed for
    # L rows and tiled (only when L is sublane-aligned, keeping tm % 8 == 0).
    reps = 0
    if kind in ("relsc", "abssc") and L % 8 == 0 and tm >= L:
        tm = (tm // L) * L
        reps = tm // L
    return tm, tn, reps


# -----------------------------------------------------------------------------
# Kernels
# -----------------------------------------------------------------------------
def _row_positions(tm, L, pos_scale):
    """Scaled position ((row % L) * pos_scale) of each row in this row block."""
    row = pl.program_id(0) * tm + lax.broadcasted_iota(jnp.int32, (tm, 1), 0)
    return (row % L).astype(jnp.float32) * pos_scale


def _linear_pe_kernel(x_ref, w_ref, bias_ref, pw_ref, o_ref, *, L, pos_scale):
    # x_ref:(tm,D) w_ref:(D,tn) bias_ref:(1,tn) (= emb_b + pos_b) pw_ref:(1,tn)
    tm = x_ref.shape[0]
    y = jnp.dot(x_ref[...], w_ref[...], preferred_element_type=jnp.float32)
    pos = _row_positions(tm, L, pos_scale)                       # (tm, 1)
    o_ref[...] = (y + bias_ref[...] + pos * pw_ref[...]).astype(o_ref.dtype)


def _sincos_pe_kernel(x_ref, w_ref, bias_ref, div_ref, phase_ref, o_ref,
                      *, L, pos_scale, reps):
    # phase = 0 on even channels (sin), pi/2 on odd channels (cos) -> a single
    # transcendental pass: sin(arg + phase).
    tm = x_ref.shape[0]
    y = jnp.dot(x_ref[...], w_ref[...], preferred_element_type=jnp.float32)
    if reps:
        # Row block spans `reps` whole sequences: compute PE for one sequence
        # (L rows) and tile it across the block (cuts sin count by reps x).
        pos = lax.broadcasted_iota(jnp.int32, (L, 1), 0).astype(jnp.float32) * pos_scale
        pe = jnp.sin(pos * div_ref[...] + phase_ref[...])        # (L, tn)
        if reps > 1:
            pe = jnp.broadcast_to(pe[None], (reps,) + pe.shape).reshape(tm, pe.shape[-1])
    else:
        pe = jnp.sin(_row_positions(tm, L, pos_scale) * div_ref[...] + phase_ref[...])
    o_ref[...] = (y + bias_ref[...] + pe).astype(o_ref.dtype)


# -----------------------------------------------------------------------------
# Parameter setup (deterministic, mirrors nn.Conv1d shapes from __init__)
# -----------------------------------------------------------------------------
def init_params(kind, d, out_feats=None, seed=0):
    out_feats = out_feats or d
    key = jax.random.PRNGKey(seed)
    k1, k2, k3, k4 = jax.random.split(key, 4)
    params = {}
    if kind in ("rel", "abs"):
        dout = d  # module forces Conv1d(d, d, 1) for these kinds
        emb_w = 0.1 * jax.random.normal(k1, (dout, d), jnp.float32)   # Conv1d(d,d,1).weight[:,:,0]
        emb_b = 0.1 * jax.random.normal(k2, (dout,), jnp.float32)
        pos_w = 0.1 * jax.random.normal(k3, (dout,), jnp.float32)     # Conv1d(1,d,1).weight[:,0,0]
        pos_b = 0.1 * jax.random.normal(k4, (dout,), jnp.float32)
        params.update(
            emb_w=emb_w, emb_b=emb_b, pos_w=pos_w, pos_b=pos_b,
            emb_w_t=emb_w.T,                 # pre-transposed for the kernel
            bias_fold=emb_b + pos_b,         # folded biases
            dout=dout)
    elif kind in ("relsc", "abssc"):
        dout = out_feats
        assert dout % 2 == 0, "SinCosEncoding requires even feature dim"
        emb_w = 0.1 * jax.random.normal(k1, (dout, d), jnp.float32)   # Conv1d(d,out_feats,1)
        emb_b = 0.1 * jax.random.normal(k2, (dout,), jnp.float32)
        div_half = jnp.exp(jnp.arange(0, dout, 2, dtype=jnp.float32)
                           * (-math.log(10000.0) / dout))
        params.update(
            emb_w=emb_w, emb_b=emb_b, emb_w_t=emb_w.T,
            div_full=jnp.repeat(div_half, 2),                          # per-channel div_term
            phase=jnp.tile(jnp.array([0.0, math.pi / 2], jnp.float32), dout // 2),
            dout=dout)
    else:
        raise ValueError("Invalid positional encoding type: " + kind)
    return params


# -----------------------------------------------------------------------------
# Forward (Pallas)
# -----------------------------------------------------------------------------
def positional_encoding_forward(x, params, kind):
    B, L, D = x.shape
    dout = params["dout"]
    M = B * L
    vmem_limit = _vmem_limit_bytes()
    tm, tn, reps = _choose_tiles(M, L, D, dout, kind, vmem_limit)

    x2d = x.reshape(M, D)                       # view, no HBM pass
    # relative -> positions scaled by 1/L, absolute -> raw positions.
    pos_scale = (1.0 / float(L)) if kind in ("rel", "relsc") else 1.0

    if kind in ("rel", "abs"):
        kern = functools.partial(_linear_pe_kernel, L=L, pos_scale=pos_scale)
        const_ops = [params["emb_w_t"],
                     params["bias_fold"].reshape(1, dout),
                     params["pos_w"].reshape(1, dout)]
    elif kind in ("relsc", "abssc"):
        kern = functools.partial(_sincos_pe_kernel, L=L, pos_scale=pos_scale, reps=reps)
        const_ops = [params["emb_w_t"],
                     params["emb_b"].reshape(1, dout),
                     params["div_full"].reshape(1, dout),
                     params["phase"].reshape(1, dout)]
    else:
        raise ValueError("Invalid positional encoding type: " + kind)

    grid = (pl.cdiv(M, tm), pl.cdiv(dout, tn))  # ragged last blocks are masked
    out_shape = jax.ShapeDtypeStruct((M, dout), x.dtype)
    cparams = pltpu.CompilerParams(
        dimension_semantics=("parallel", "arbitrary"),
        vmem_limit_bytes=vmem_limit)
    # Constants are grid-invariant (single-bufferable) only when not N-tiled.
    single_consts_ok = tn == dout

    def run(single_buffer_consts):
        if single_buffer_consts:
            def const_spec(shape):
                return pl.BlockSpec(shape, lambda i, j: (0, j),
                                    pipeline_mode=pl.Buffered(1))
        else:
            def const_spec(shape):
                return pl.BlockSpec(shape, lambda i, j: (0, j))
        x_spec = pl.BlockSpec((tm, D), lambda i, j: (i, 0))
        in_specs = ([x_spec, const_spec((D, tn))]
                    + [const_spec((1, tn))] * (len(const_ops) - 1))
        out_spec = pl.BlockSpec((tm, tn), lambda i, j: (i, j))
        return pl.pallas_call(
            kern,
            out_shape=out_shape,
            grid_spec=pltpu.PrefetchScalarGridSpec(
                num_scalar_prefetch=0, grid=grid,
                in_specs=in_specs, out_specs=out_spec),
            compiler_params=cparams,
        )(x2d, *const_ops)

    if single_consts_ok:
        try:
            out2d = run(True)
        except Exception:
            # pl.Buffered(1) unsupported on this jax version -> double buffer.
            out2d = run(False)
    else:
        out2d = run(False)
    return out2d.reshape(B, L, dout)


# -----------------------------------------------------------------------------
# Pure-JAX reference (mirrors the PyTorch forward exactly)
# -----------------------------------------------------------------------------
def positional_encoding_ref(x, params, kind):
    B, L, D = x.shape
    dout = params["dout"]
    xt = jnp.swapaxes(x, 1, 2)                                       # (B, D, L)
    y = jnp.einsum("od,bdl->bol", params["emb_w"], xt) + params["emb_b"][None, :, None]
    pos = jnp.arange(L, dtype=jnp.float32)
    if kind in ("rel", "relsc"):
        pos = pos / float(L)
    if kind in ("rel", "abs"):
        pe = params["pos_w"][:, None] * pos[None, :] + params["pos_b"][:, None]
    else:
        div_half = params["div_full"][0::2]                          # (dout/2,)
        arg = pos[None, :] * div_half[:, None]                       # (dout/2, L)
        pe = jnp.zeros((dout, L), jnp.float32)
        pe = pe.at[0::2, :].set(jnp.sin(arg)).at[1::2, :].set(jnp.cos(arg))
    out = y + pe[None]
    return jnp.swapaxes(out, 1, 2)


# -----------------------------------------------------------------------------
if __name__ == "__main__":
    cases = [
        # (B,  L,  D, kind,    out_feats)
        (2, 16, 32, "rel",   None),
        (2, 16, 32, "abs",   None),
        (2, 16, 32, "relsc", 32),
        (2, 16, 32, "abssc", 32),
        (8, 16, 32, "relsc", 64),   # row blocks span 2 sequences -> tiled-PE path
        (3, 10, 24, "abs",   None),  # ragged rows (M = 30, not a multiple of tm)
        (3, 10, 24, "abssc", 40),   # ragged rows + per-row sin path (L % 8 != 0)
    ]
    for idx, (B, L, D, kind, out_feats) in enumerate(cases):
        params = init_params(kind, D, out_feats=out_feats, seed=idx)
        kx = jax.random.fold_in(jax.random.PRNGKey(0), idx)
        x = jax.random.normal(kx, (B, L, D), jnp.float32)
        out = jax.block_until_ready(positional_encoding_forward(x, params, kind))
        ref = positional_encoding_ref(x, params, kind)
        assert out.shape == ref.shape, (kind, out.shape, ref.shape)
        assert jnp.allclose(out, ref, atol=2e-5, rtol=2e-5), \
            f"mismatch for kind={kind} shape={(B, L, D)}"
    print("KERNEL_OK")
</pallas_src>

<mosaic_0001>
module attributes {stable_mosaic.version = 11 : i64} {
  func.func @_linear_pe_kernel(%arg0: i32, %arg1: i32, %arg2: memref<8x32xf32, #tpu.memory_space<vmem>>, %arg3: memref<32x32xf32, #tpu.memory_space<vmem>>, %arg4: memref<1x32xf32, #tpu.memory_space<vmem>>, %arg5: memref<1x32xf32, #tpu.memory_space<vmem>>, %arg6: memref<8x32xf32, #tpu.memory_space<vmem>>) attributes {dimension_semantics = [#tpu.dimension_semantics<parallel>, #tpu.dimension_semantics<arbitrary>], iteration_bounds = array<i64: 4, 1>, scalar_prefetch = 0 : i64, scratch_operands = 0 : i64, tpu.core_type = #tpu.core_type<tc>, window_params = [{transform_indices = @transform_0, window_bounds = array<i64: 8, 32>}, {pipeline_mode = #tpu.pipeline_mode<synchronous>, transform_indices = @transform_1, window_bounds = array<i64: 32, 32>}, {pipeline_mode = #tpu.pipeline_mode<synchronous>, transform_indices = @transform_2, window_bounds = array<i64: 1, 32>}, {pipeline_mode = #tpu.pipeline_mode<synchronous>, transform_indices = @transform_3, window_bounds = array<i64: 1, 32>}, {transform_indices = @transform_4, window_bounds = array<i64: 8, 32>}]} {
    %c0 = arith.constant 0 : index
    %c0_0 = arith.constant 0 : index
    %0 = vector.load %arg2[%c0, %c0_0] : memref<8x32xf32, #tpu.memory_space<vmem>>, vector<8x32xf32>
    %c0_1 = arith.constant 0 : index
    %c0_2 = arith.constant 0 : index
    %1 = vector.load %arg3[%c0_1, %c0_2] : memref<32x32xf32, #tpu.memory_space<vmem>>, vector<32x32xf32>
    %cst = arith.constant dense<0.000000e+00> : vector<8x32xf32>
    %2 = tpu.matmul %0, %1, %cst {dimension_numbers = #tpu.dot_dimension_numbers<[1], [0], [0], [1], [0, 0, 1, 1], [], []>} : vector<8x32xf32>, vector<32x32xf32>, vector<8x32xf32> -> vector<8x32xf32>
    %c8_i32 = arith.constant 8 : i32
    %3 = arith.muli %arg0, %c8_i32 : i32
    %4 = tpu.iota {dimensions = array<i32: 0>} : vector<8x1xi32>
    %5 = vector.broadcast %3 : i32 to vector<8x1xi32>
    %6 = arith.addi %5, %4 : vector<8x1xi32>
    %c16_i32 = arith.constant 16 : i32
    %c0_i32 = arith.constant 0 : i32
    %7 = arith.cmpi eq, %c16_i32, %c0_i32 : i32
    %c1_i32 = arith.constant 1 : i32
    %8 = arith.select %7, %c1_i32, %c16_i32 : i32
    %9 = vector.broadcast %8 : i32 to vector<8x1xi32>
    %10 = arith.remsi %6, %9 : vector<8x1xi32>
    %c0_i32_3 = arith.constant 0 : i32
    %11 = vector.broadcast %c0_i32_3 : i32 to vector<8x1xi32>
    %12 = arith.cmpi ne, %10, %11 : vector<8x1xi32>
    %c0_i32_4 = arith.constant 0 : i32
    %13 = vector.broadcast %c0_i32_4 : i32 to vector<8x1xi32>
    %14 = arith.cmpi slt, %10, %13 : vector<8x1xi32>
    %c0_i32_5 = arith.constant 0 : i32
    %15 = arith.cmpi slt, %8, %c0_i32_5 : i32
    %16 = vector.broadcast %15 : i1 to vector<8x1xi1>
    %17 = vector.broadcast %16 : vector<8x1xi1> to vector<8x1xi1>
    %18 = arith.xori %14, %17 : vector<8x1xi1>
    %19 = arith.andi %18, %12 : vector<8x1xi1>
    %20 = vector.broadcast %8 : i32 to vector<8x1xi32>
    %21 = arith.addi %10, %20 : vector<8x1xi32>
    %22 = arith.select %19, %21, %10 : vector<8x1xi1>, vector<8x1xi32>
    %23 = arith.sitofp %22 : vector<8x1xi32> to vector<8x1xf32>
    %cst_6 = arith.constant 6.250000e-02 : f32
    %24 = vector.broadcast %cst_6 : f32 to vector<8x1xf32>
    %25 = arith.mulf %23, %24 : vector<8x1xf32>
    %c0_7 = arith.constant 0 : index
    %c0_8 = arith.constant 0 : index
    %26 = vector.load %arg4[%c0_7, %c0_8] : memref<1x32xf32, #tpu.memory_space<vmem>>, vector<1x32xf32>
    %27 = vector.broadcast %26 : vector<1x32xf32> to vector<8x32xf32>
    %28 = arith.addf %2, %27 : vector<8x32xf32>
    %c0_9 = arith.constant 0 : index
    %c0_10 = arith.constant 0 : index
    %29 = vector.load %arg5[%c0_9, %c0_10] : memref<1x32xf32, #tpu.memory_space<vmem>>, vector<1x32xf32>
    %30 = vector.broadcast %25 : vector<8x1xf32> to vector<8x32xf32>
    %31 = vector.broadcast %29 : vector<1x32xf32> to vector<8x32xf32>
    %32 = arith.mulf %30, %31 : vector<8x32xf32>
    %33 = arith.addf %28, %32 : vector<8x32xf32>
    %c0_11 = arith.constant 0 : index
    %c0_12 = arith.constant 0 : index
    %34 = vector.load %arg6[%c0_11, %c0_12] : memref<8x32xf32, #tpu.memory_space<vmem>>, vector<8x32xf32>
    tpu.vector_store %arg6[%c0_11, %c0_12], %33 {strides = array<i32>} : memref<8x32xf32, #tpu.memory_space<vmem>>, vector<8x32xf32>,
    return
  }
  func.func @transform_0(%arg0: i32, %arg1: i32) -> (i32, i32) {
    %c0_i32 = arith.constant 0 : i32
    %c0_i32_0 = arith.constant 0 : i32
    return %arg0, %c0_i32 : i32, i32
  }
  func.func @transform_1(%arg0: i32, %arg1: i32) -> (i32, i32) {
    %c0_i32 = arith.constant 0 : i32
    %c0_i32_0 = arith.constant 0 : i32
    return %c0_i32, %arg1 : i32, i32
  }
  func.func @transform_2(%arg0: i32, %arg1: i32) -> (i32, i32) {
    %c0_i32 = arith.constant 0 : i32
    %c0_i32_0 = arith.constant 0 : i32
    return %c0_i32, %arg1 : i32, i32
  }
  func.func @transform_3(%arg0: i32, %arg1: i32) -> (i32, i32) {
    %c0_i32 = arith.constant 0 : i32
    %c0_i32_0 = arith.constant 0 : i32
    return %c0_i32, %arg1 : i32, i32
  }
  func.func @transform_4(%arg0: i32, %arg1: i32) -> (i32, i32) {
    %c0_i32 = arith.constant 0 : i32
    return %arg0, %arg1 : i32, i32
  }
}

module attributes {stable_mosaic.version = 11 : i64} {
  func.func @_linear_pe_kernel(%arg0: i32, %arg1: i32, %arg2: memref<8x32xf32, #tpu.memory_space<vmem>>, %arg3: memref<32x32xf32, #tpu.memory_space<vmem>>, %arg4: memref<1x32xf32, #tpu.memory_space<vmem>>, %arg5: memref<1x32xf32, #tpu.memory_space<vmem>>, %arg6: memref<8x32xf32, #tpu.memory_space<vmem>>) attributes {dimension_semantics = [#tpu.dimension_semantics<parallel>, #tpu.dimension_semantics<arbitrary>], iteration_bounds = array<i64: 4, 1>, scalar_prefetch = 0 : i64, scratch_operands = 0 : i64, tpu.core_type = #tpu.core_type<tc>, window_params = [{transform_indices = @transform_0, window_bounds = array<i64: 8, 32>}, {transform_indices = @transform_1, window_bounds = array<i64: 32, 32>}, {transform_indices = @transform_2, window_bounds = array<i64: 1, 32>}, {transform_indices = @transform_3, window_bounds = array<i64: 1, 32>}, {transform_indices = @transform_4, window_bounds = array<i64: 8, 32>}]} {
    %c0 = arith.constant 0 : index
    %c0_0 = arith.constant 0 : index
    %0 = vector.load %arg2[%c0, %c0_0] : memref<8x32xf32, #tpu.memory_space<vmem>>, vector<8x32xf32>
    %c0_1 = arith.constant 0 : index
    %c0_2 = arith.constant 0 : index
    %1 = vector.load %arg3[%c0_1, %c0_2] : memref<32x32xf32, #tpu.memory_space<vmem>>, vector<32x32xf32>
    %cst = arith.constant dense<0.000000e+00> : vector<8x32xf32>
    %2 = tpu.matmul %0, %1, %cst {dimension_numbers = #tpu.dot_dimension_numbers<[1], [0], [0], [1], [0, 0, 1, 1], [], []>} : vector<8x32xf32>, vector<32x32xf32>, vector<8x32xf32> -> vector<8x32xf32>
    %c8_i32 = arith.constant 8 : i32
    %3 = arith.muli %arg0, %c8_i32 : i32
    %4 = tpu.iota {dimensions = array<i32: 0>} : vector<8x1xi32>
    %5 = vector.broadcast %3 : i32 to vector<8x1xi32>
    %6 = arith.addi %5, %4 : vector<8x1xi32>
    %c16_i32 = arith.constant 16 : i32
    %c0_i32 = arith.constant 0 : i32
    %7 = arith.cmpi eq, %c16_i32, %c0_i32 : i32
    %c1_i32 = arith.constant 1 : i32
    %8 = arith.select %7, %c1_i32, %c16_i32 : i32
    %9 = vector.broadcast %8 : i32 to vector<8x1xi32>
    %10 = arith.remsi %6, %9 : vector<8x1xi32>
    %c0_i32_3 = arith.constant 0 : i32
    %11 = vector.broadcast %c0_i32_3 : i32 to vector<8x1xi32>
    %12 = arith.cmpi ne, %10, %11 : vector<8x1xi32>
    %c0_i32_4 = arith.constant 0 : i32
    %13 = vector.broadcast %c0_i32_4 : i32 to vector<8x1xi32>
    %14 = arith.cmpi slt, %10, %13 : vector<8x1xi32>
    %c0_i32_5 = arith.constant 0 : i32
    %15 = arith.cmpi slt, %8, %c0_i32_5 : i32
    %16 = vector.broadcast %15 : i1 to vector<8x1xi1>
    %17 = vector.broadcast %16 : vector<8x1xi1> to vector<8x1xi1>
    %18 = arith.xori %14, %17 : vector<8x1xi1>
    %19 = arith.andi %18, %12 : vector<8x1xi1>
    %20 = vector.broadcast %8 : i32 to vector<8x1xi32>
    %21 = arith.addi %10, %20 : vector<8x1xi32>
    %22 = arith.select %19, %21, %10 : vector<8x1xi1>, vector<8x1xi32>
    %23 = arith.sitofp %22 : vector<8x1xi32> to vector<8x1xf32>
    %cst_6 = arith.constant 6.250000e-02 : f32
    %24 = vector.broadcast %cst_6 : f32 to vector<8x1xf32>
    %25 = arith.mulf %23, %24 : vector<8x1xf32>
    %c0_7 = arith.constant 0 : index
    %c0_8 = arith.constant 0 : index
    %26 = vector.load %arg4[%c0_7, %c0_8] : memref<1x32xf32, #tpu.memory_space<vmem>>, vector<1x32xf32>
    %27 = vector.broadcast %26 : vector<1x32xf32> to vector<8x32xf32>
    %28 = arith.addf %2, %27 : vector<8x32xf32>
    %c0_9 = arith.constant 0 : index
    %c0_10 = arith.constant 0 : index
    %29 = vector.load %arg5[%c0_9, %c0_10] : memref<1x32xf32, #tpu.memory_space<vmem>>, vector<1x32xf32>
    %30 = vector.broadcast %25 : vector<8x1xf32> to vector<8x32xf32>
    %31 = vector.broadcast %29 : vector<1x32xf32> to vector<8x32xf32>
    %32 = arith.mulf %30, %31 : vector<8x32xf32>
    %33 = arith.addf %28, %32 : vector<8x32xf32>
    %c0_11 = arith.constant 0 : index
    %c0_12 = arith.constant 0 : index
    %34 = vector.load %arg6[%c0_11, %c0_12] : memref<8x32xf32, #tpu.memory_space<vmem>>, vector<8x32xf32>
    tpu.vector_store %arg6[%c0_11, %c0_12], %33 {strides = array<i32>} : memref<8x32xf32, #tpu.memory_space<vmem>>, vector<8x32xf32>,
    return
  }
  func.func @transform_0(%arg0: i32, %arg1: i32) -> (i32, i32) {
    %c0_i32 = arith.constant 0 : i32
    %c0_i32_0 = arith.constant 0 : i32
    return %arg0, %c0_i32 : i32, i32
  }
  func.func @transform_1(%arg0: i32, %arg1: i32) -> (i32, i32) {
    %c0_i32 = arith.constant 0 : i32
    %c0_i32_0 = arith.constant 0 : i32
    return %c0_i32, %arg1 : i32, i32
  }
  func.func @transform_2(%arg0: i32, %arg1: i32) -> (i32, i32) {
    %c0_i32 = arith.constant 0 : i32
    %c0_i32_0 = arith.constant 0 : i32
    return %c0_i32, %arg1 : i32, i32
  }
  func.func @transform_3(%arg0: i32, %arg1: i32) -> (i32, i32) {
    %c0_i32 = arith.constant 0 : i32
    %c0_i32_0 = arith.constant 0 : i32
    return %c0_i32, %arg1 : i32, i32
  }
  func.func @transform_4(%arg0: i32, %arg1: i32) -> (i32, i32) {
    %c0_i32 = arith.constant 0 : i32
    return %arg0, %arg1 : i32, i32
  }
}

</mosaic_0001>

<llo_original>
// kernel: tpu_custom_call.1
$region0: #{tpu_custom_call.1}
  #allocation0 [shape = 'u32[]', space=smem, size = 0x4, offset = 0x4, fixed_abs, tag = 'smem constant byte address 0x4 - core index']
  #allocation1 [shape = 'u32[144,128]{1,0:T(1,128)}', space=vmem, size = 0x12000, scoped, tag = 'internal scratch']
  %s0 = inlined_call_operand.hbm [shape: f32[32,32], index: 0, kind: input, shape index: {}]
  %s1 = inlined_call_operand.hbm [shape: f32[32,32], index: 1, kind: input, shape index: {}]
  %s2 = inlined_call_operand.vmem [shape: f32[1,32], index: 2, kind: input, shape index: {}]
  %s3 = inlined_call_operand.vmem [shape: f32[1,32], index: 3, kind: input, shape index: {}]
  %s4 = inlined_call_operand.hbm [shape: f32[32,32], index: 4, kind: output, shape index: {}]
  %s5 = sld [smem:[#allocation0]]
  $region57: #{tpu_custom_call.1} parent=0
    _
  %s7 = ssub.s32 1, %s5
  %s8 = scalar_select 0, %s7, %s5
  $region1: #{tpu_custom_call.1} parent=0
    #allocation2 [shape = 'u8[8192]{0}', space=vmem, size = 0x2000, scoped, tag = 'input window, operand 0']
    #allocation3 [shape = 's32[2]{0}', space=sflag, size = 0x8, scoped, tag = 'scoped memory for tpu_custom_call.1']
    #allocation4 [shape = 's32[2]{0}', space=sflag, size = 0x8, scoped, tag = 'scoped memory for tpu_custom_call.1']
    #allocation5 [shape = 'u8[16384]{0}', space=vmem, size = 0x4000, scoped, tag = 'input window, operand 1, single buffered']
    #allocation6 [shape = 's32[1]{0}', space=sflag, size = 0x4, scoped, tag = 'scoped memory for tpu_custom_call.1']
    #allocation7 [shape = 'u8[8192]{0}', space=vmem, size = 0x2000, scoped, tag = 'output window, operand 0']
    %9 = vsyncpa [#allocation3], 0
    %s10 = scalar_lea.sflag [#allocation3], 1
    %11 = vsyncpa %s10, 0
    %12 = vsyncpa [#allocation6], 0
    %13 = vsyncpa [#allocation4], 0
    %s14 = scalar_lea.sflag [#allocation4], 1
    %15 = vsyncpa %s14, 0
    loop: start=0, step=1, limit=6
    $region2: #{tpu_custom_call.1} parent=1 // loop_pre_header
      _
    $region3: #{tpu_custom_call.1} parent=1 // loop_header
      %s17 = sphi 0, %s21
      %p18 = scmp.ge.s32.totalorder %s17, 6
      %s24 = sphi 0, %s36
      %s25 = sphi 0, %s32
      %s26 = sphi 0, %s24
      %s27 = sphi 0, %s25
      %s28 = sphi 0, %s26
      %s29 = sphi 0, %s27
      %s39 = sphi 0, %s41
      %s42 = sphi 0, %s39
      %s43 = sphi 0, %s42
      %s59 = sphi 0, %s43
      %s65 = sphi 0, %s67
      %s68 = sphi 0, %s65
      %s69 = sphi 0, %s68
      %s85 = sphi 0, %s69
      %s91 = sphi 0, %s93
      %s94 = sphi 0, %s91
      %s95 = sphi 0, %s94
      %s111 = sphi 0, %s95
      %s117 = sphi 0, %s119
      %s120 = sphi 0, %s117
      %s121 = sphi 0, %s120
      %s137 = sphi 0, %s121
      %s145 = sphi 0, %s147
      %s148 = sphi 0, %s145
      %s149 = sphi 0, %s148
      %s165 = sphi 0, %s149
    $region4: #{tpu_custom_call.1} parent=1 // loop_header_branch
      %20 = sbr.rel (%p18) target = $region8
    $region5: #{tpu_custom_call.1} parent=1 // loop_body
      %s22 = ssub.s32 %s17, 1
      %s23 = ssub.s32 %s17, 2
      %s30 = sadd.s32 1, %s25
      %p31 = scmp.ge.s32.totalorder %s30, 1
      %s32 = scalar_select %p31, 0, %s30
      %s33 = sadd.s32 1, %s24
      %s34 = scalar_select %p31, %s33, %s24
      %p35 = scmp.ge.s32.totalorder %s34, 4
      %s36 = scalar_select %p35, 0, %s34
      %s37 = ssub.s32 %s24, %s36
      %p38 = scmp.eq.s32.totalorder %s37, 0
      %s40 = sadd.s32 %s39, 1
      %s41 = scalar_select %p38, %s39, %s40
      %p44 = pneg %p38
      %p45 = scmp.eq.s32.totalorder %s17, 3
      %p46 = por %p44, %p45
      %p47 = scmp.ne.s32.totalorder %s39, %s42
      %p48 = scmp.eq.s32.totalorder %s17, 0
      %p49 = por %p47, %p48
      %p50 = scmp.ne.s32.totalorder %s39, %s42
      %p51 = scmp.eq.s32.totalorder %s22, 3
      %p52 = por %p50, %p51
      %p53 = scmp.ne.s32.totalorder %s42, %s43
      %p54 = scmp.eq.s32.totalorder %s22, 0
      %p55 = por %p53, %p54
      %p56 = scmp.ne.s32.totalorder %s42, %s43
      %p57 = scmp.eq.s32.totalorder %s23, 3
      %p58 = por %p56, %p57
      %p60 = scmp.ne.s32.totalorder %s43, %s59
      %p61 = scmp.eq.s32.totalorder %s23, 0
      %p62 = por %p60, %p61
      %s63 = ssub.s32 %s25, %s32
      %p64 = scmp.eq.s32.totalorder %s63, 0
      %s66 = sadd.s32 %s65, 1
      %s67 = scalar_select %p64, %s65, %s66
      %p70 = pneg %p64
      %p71 = scmp.eq.s32.totalorder %s17, 3
      %p72 = por %p70, %p71
      %p73 = scmp.ne.s32.totalorder %s65, %s68
      %p74 = scmp.eq.s32.totalorder %s17, 0
      %p75 = por %p73, %p74
      %p76 = scmp.ne.s32.totalorder %s65, %s68
      %p77 = scmp.eq.s32.totalorder %s22, 3
      %p78 = por %p76, %p77
      %p79 = scmp.ne.s32.totalorder %s68, %s69
      %p80 = scmp.eq.s32.totalorder %s22, 0
      %p81 = por %p79, %p80
      %p82 = scmp.ne.s32.totalorder %s68, %s69
      %p83 = scmp.eq.s32.totalorder %s23, 3
      %p84 = por %p82, %p83
      %p86 = scmp.ne.s32.totalorder %s69, %s85
      %p87 = scmp.eq.s32.totalorder %s23, 0
      %p88 = por %p86, %p87
      %s89 = ssub.s32 %s25, %s32
      %p90 = scmp.eq.s32.totalorder %s89, 0
      %s92 = sadd.s32 %s91, 1
      %s93 = scalar_select %p90, %s91, %s92
      %p96 = pneg %p90
      %p97 = scmp.eq.s32.totalorder %s17, 3
      %p98 = por %p96, %p97
      %p99 = scmp.ne.s32.totalorder %s91, %s94
      %p100 = scmp.eq.s32.totalorder %s17, 0
      %p101 = por %p99, %p100
      %p102 = scmp.ne.s32.totalorder %s91, %s94
      %p103 = scmp.eq.s32.totalorder %s22, 3
      %p104 = por %p102, %p103
      %p105 = scmp.ne.s32.totalorder %s94, %s95
      %p106 = scmp.eq.s32.totalorder %s22, 0
      %p107 = por %p105, %p106
      %p108 = scmp.ne.s32.totalorder %s94, %s95
      %p109 = scmp.eq.s32.totalorder %s23, 3
      %p110 = por %p108, %p109
      %p112 = scmp.ne.s32.totalorder %s95, %s111
      %p113 = scmp.eq.s32.totalorder %s23, 0
      %p114 = por %p112, %p113
      %s115 = ssub.s32 %s25, %s32
      %p116 = scmp.eq.s32.totalorder %s115, 0
      %s118 = sadd.s32 %s117, 1
      %s119 = scalar_select %p116, %s117, %s118
      %p122 = pneg %p116
      %p123 = scmp.eq.s32.totalorder %s17, 3
      %p124 = por %p122, %p123
      %p125 = scmp.ne.s32.totalorder %s117, %s120
      %p126 = scmp.eq.s32.totalorder %s17, 0
      %p127 = por %p125, %p126
      %p128 = scmp.ne.s32.totalorder %s117, %s120
      %p129 = scmp.eq.s32.totalorder %s22, 3
      %p130 = por %p128, %p129
      %p131 = scmp.ne.s32.totalorder %s120, %s121
      %p132 = scmp.eq.s32.totalorder %s22, 0
      %p133 = por %p131, %p132
      %p134 = scmp.ne.s32.totalorder %s120, %s121
      %p135 = scmp.eq.s32.totalorder %s23, 3
      %p136 = por %p134, %p135
      %p138 = scmp.ne.s32.totalorder %s121, %s137
      %p139 = scmp.eq.s32.totalorder %s23, 0
      %p140 = por %p138, %p139
      %s141 = ssub.s32 %s24, %s36
      %s142 = ssub.s32 %s25, %s32
      %s143 = sor.u32 %s141, %s142
      %p144 = scmp.eq.s32.totalorder %s143, 0
      %s146 = sadd.s32 %s145, 1
      %s147 = scalar_select %p144, %s145, %s146
      %p150 = pneg %p144
      %p151 = scmp.eq.s32.totalorder %s17, 3
      %p152 = por %p150, %p151
      %p153 = scmp.ne.s32.totalorder %s145, %s148
      %p154 = scmp.eq.s32.totalorder %s17, 0
      %p155 = por %p153, %p154
      %p156 = scmp.ne.s32.totalorder %s145, %s148
      %p157 = scmp.eq.s32.totalorder %s22, 3
      %p158 = por %p156, %p157
      %p159 = scmp.ne.s32.totalorder %s148, %s149
      %p160 = scmp.eq.s32.totalorder %s22, 0
      %p161 = por %p159, %p160
      %p162 = scmp.ne.s32.totalorder %s148, %s149
      %p163 = scmp.eq.s32.totalorder %s23, 3
      %p164 = por %p162, %p163
      %p166 = scmp.ne.s32.totalorder %s149, %s165
      %p167 = scmp.eq.s32.totalorder %s23, 0
      %p168 = por %p166, %p167
      %p169 = scmp.le.s32.totalorder 1, %s17
      %p170 = scmp.lt.s32.totalorder %s17, 5
      %p171 = pnand %p169, %p170
      %p172 = pneg %p171
      // Predicated region
      $region9: #{tpu_custom_call.1} parent=5 // pred_check
        _
      $region10: #{tpu_custom_call.1} parent=5 // pred_check_branch
        %174 = sbr.rel (%p171) target = $region12
      $region11: #{tpu_custom_call.1} parent=5 // pred_region
        %s175 = ssub.s32 %s17, 1
        // Predicated region
        $region13: #{tpu_custom_call.1} parent=11 // pred_check
          %p176 = pneg %p81
        $region14: #{tpu_custom_call.1} parent=11 // pred_check_branch
          %178 = sbr.rel (%p176) target = $region16
        $region15: #{tpu_custom_call.1} parent=11 // pred_region
          %s180 = ssub.s32 512, 512
          %181 = vsyncadd [#allocation6], %s180
          %s182 = smul.addr %s27, 128
          %s183 = scalar_lea.hbm %s1, %s182
          %s184 = sshll.u32 [#allocation5], 4
          %s185 = int_to_ptr.vmem [resolvable:$true] %s184
          %190 = dma.hbm_to_vmem [thread:$0]  %s183, 512, %s185, [#allocation6], 128, 128, 8
        $region16: #{tpu_custom_call.1} parent=11 // pred_fallthru
          _
        // Predicated region
        $region17: #{tpu_custom_call.1} parent=11 // pred_check
          %p191 = pneg %p107
        $region18: #{tpu_custom_call.1} parent=11 // pred_check_branch
          %193 = sbr.rel (%p191) target = $region20
        $region19: #{tpu_custom_call.1} parent=11 // pred_region
          %p194 = scmp.lt.s32.totalorder %s27, 0
          %s195 = scalar_select %p194, %s27, 0
          %s196 = scalar_lea.vmem %s2, %s195
        $region20: #{tpu_custom_call.1} parent=11 // pred_fallthru
          _
        // Predicated region
        $region21: #{tpu_custom_call.1} parent=11 // pred_check
          %p197 = pneg %p133
        $region22: #{tpu_custom_call.1} parent=11 // pred_check_branch
          %199 = sbr.rel (%p197) target = $region24
        $region23: #{tpu_custom_call.1} parent=11 // pred_region
          %p200 = scmp.lt.s32.totalorder %s27, 0
          %s201 = scalar_select %p200, %s27, 0
          %s202 = scalar_lea.vmem %s3, %s201
        $region24: #{tpu_custom_call.1} parent=11 // pred_fallthru
          _
      $region12: #{tpu_custom_call.1} parent=5 // pred_fallthru
        _
      %p203 = scmp.lt.s32.totalorder %s17, 4
      // Predicated region
      $region25: #{tpu_custom_call.1} parent=5 // pred_check
        %p204 = pneg %p203
      $region26: #{tpu_custom_call.1} parent=5 // pred_check_branch
        %206 = sbr.rel (%p204) target = $region28
      $region27: #{tpu_custom_call.1} parent=5 // pred_region
        // Predicated region
        $region29: #{tpu_custom_call.1} parent=27 // pred_check
          %p207 = pneg %p49
        $region30: #{tpu_custom_call.1} parent=27 // pred_check_branch
          %209 = sbr.rel (%p207) target = $region32
        $region31: #{tpu_custom_call.1} parent=27 // pred_region
          %s210 = sand.u32 %s39, 1
          %s211 = scalar_lea.sflag [#allocation3], %s210
          %s212 = sand.u32 %s39, 1
          %s213 = smul.addr %s212, 8
          %s214 = scalar_lea.vmem [#allocation2], %s213
          %s216 = ssub.s32 128, 128
          %217 = vsyncadd %s211, %s216
          %s218 = smul.addr %s24, 128
          %s219 = scalar_lea.hbm %s0, %s218
          %s221 = sshll.u32 %s214, 4
          %s222 = int_to_ptr.vmem [resolvable:$true] %s221
          %224 = dma.hbm_to_vmem [thread:$0]  %s219, 128, %s222, %s211
        $region32: #{tpu_custom_call.1} parent=27 // pred_fallthru
          _
      $region28: #{tpu_custom_call.1} parent=5 // pred_fallthru
        _
      %p225 = scmp.le.s32.totalorder 1, %s17
      %p226 = scmp.lt.s32.totalorder %s17, 5
      %p227 = pnand %p225, %p226
      %p228 = pneg %p227
      // Predicated region
      $region33: #{tpu_custom_call.1} parent=5 // pred_check
        _
      $region34: #{tpu_custom_call.1} parent=5 // pred_check_branch
        %230 = sbr.rel (%p227) target = $region36
      $region35: #{tpu_custom_call.1} parent=5 // pred_region
        %s231 = ssub.s32 %s17, 1
        %s232 = sand.u32 %s42, 1
        %s233 = scalar_lea.sflag [#allocation3], %s232
        %s234 = sand.u32 %s42, 1
        %s235 = smul.addr %s234, 8
        %s236 = scalar_lea.vmem [#allocation2], %s235
        // Predicated region
        $region37: #{tpu_custom_call.1} parent=35 // pred_check
          %p237 = pneg %p55
        $region38: #{tpu_custom_call.1} parent=35 // pred_check_branch
          %239 = sbr.rel (%p237) target = $region40
        $region39: #{tpu_custom_call.1} parent=35 // pred_region
          %240 = dma.done %s233, 128
        $region40: #{tpu_custom_call.1} parent=35 // pred_fallthru
          _
        // Predicated region
        $region41: #{tpu_custom_call.1} parent=35 // pred_check
          %p241 = pneg %p81
        $region42: #{tpu_custom_call.1} parent=35 // pred_check_branch
          %243 = sbr.rel (%p241) target = $region44
        $region43: #{tpu_custom_call.1} parent=35 // pred_region
          %244 = dma.done [#allocation6], 512
        $region44: #{tpu_custom_call.1} parent=35 // pred_fallthru
          _
        %s245 = sand.u32 %s42, 1
        %s246 = scalar_lea.sflag [#allocation3], %s245
        %s247 = sand.u32 %s42, 1
        %s248 = smul.addr %s247, 8
        %s249 = scalar_lea.vmem [#allocation2], %s248
        %p250 = pneg %p55
        %p251 = pneg %p52
        %p252 = pneg %p81
        %p253 = pneg %p78
        %p254 = scmp.lt.s32.totalorder %s27, 0
        %s255 = scalar_select %p254, %s27, 0
        %s256 = scalar_lea.vmem %s2, %s255
        %p257 = pneg %p107
        %p258 = pneg %p104
        %p259 = scmp.lt.s32.totalorder %s27, 0
        %s260 = scalar_select %p259, %s27, 0
        %s261 = scalar_lea.vmem %s3, %s260
        %p262 = pneg %p133
        %p263 = pneg %p130
        %p264 = pneg %p161
        %p265 = pneg %p158
        %s266 = sand.u32 %s148, 1
        %s267 = scalar_lea.sflag [#allocation4], %s266
        %s268 = sand.u32 %s148, 1
        %s269 = smul.addr %s268, 8
        %s270 = scalar_lea.vmem [#allocation7], %s269
        %p271 = scmp.lt.s32.totalorder %s27, 0
        %s272 = scalar_select %p271, %s27, 0
        %s273 = scalar_lea.vmem %s2, %s272
        %p274 = scmp.lt.s32.totalorder %s27, 0
        %s275 = scalar_select %p274, %s27, 0
        %s276 = scalar_lea.vmem %s3, %s275
        %v277 = vld [vmem:[%s236] sm:$0xff]
        %v278 = vld [vmem:[#allocation5] sm:$0xff]
        %v279 = vld [vmem:[#allocation5 + $0x8] sm:$0xff]
        %v280 = vld [vmem:[#allocation5 + $0x10] sm:$0xff]
        %v281 = vld [vmem:[#allocation5 + $0x18] sm:$0xff]
        %s282 = smul.u32 %s26, 8
        %v283 = vlaneseq
        %v284 = vshrl.u32 %v283, 7
        %v285 = vstv %s282
        %v286 = vadd.s32 %v285, %v284
        %vm287 = vcmp.lt.s32.totalorder %v286, 0
        %v288 = vsub.s32 0, %v286
        %v289 = vsel %vm287, %v288, %v286
        %v290 = vshrl.u32 %v289, 4
        %v291 = vand.u32 %v289, 15
        %v292 = vsub.s32 0, %v291
        %v293 = vsel %vm287, %v292, %v291
        %vm294 = vcmp.ne.s32.totalorder %v293, 0
        %vm295 = vcmp.lt.s32.totalorder %v293, 0
        %vm296 = vmand %vm295, %vm294
        %v297 = vadd.s32 %v293, 16
        %v298 = vsel %vm296, %v297, %v293
        %v299 = vcvt.s32.f32 %v298
        %v300 = vmul.f32 %v299, 0.0625
        %v301 = vld [vmem:[%s273] sm:$0x1]
        %v303 = vlaneseq
        %v304 = vshrl.u32 %v303, 7
        %v305 = vsub.s32 0, %v304
        %v306 = vrot.slane %v301, %v305
        %vm308 = vcmask 261120
        %v310 = vsel %vm308, %v277, 0
        %312 = vmatprep.subr.mxu0 0.0
        %313 = vmatpush1.msra.mxu0 %v278
        %314 = vmatprep.subr.mxu0 0.0
        %315 = vmatpush1.msra.mxu0 %v279
        %316 = vmatprep.subr.mxu0 0.0
        %317 = vmatpush1.msra.mxu0 %v280
        %318 = vmatprep.subr.mxu0 0.0
        %319 = vmatpush1.msra.mxu0 %v281
        %320 = vmatprep.subr.mxu0 0.0
        %321 = vmatpush1.msra.mxu0 0.0
        %322 = vmatprep.subr.mxu0 0.0
        %323 = vmatpush1.msra.mxu0 0.0
        %324 = vmatprep.subr.mxu0 0.0
        %325 = vmatpush1.msra.mxu0 0.0
        %326 = vmatprep.subr.mxu0 0.0
        %327 = vmatpush1.msra.mxu0 0.0
        %328 = vmatprep.subr.mxu0 0.0
        %329 = vmatpush1.msra.mxu0 0.0
        %330 = vmatprep.subr.mxu0 0.0
        %331 = vmatpush1.msra.mxu0 0.0
        %332 = vmatprep.subr.mxu0 0.0
        %333 = vmatpush1.msra.mxu0 0.0
        %334 = vmatprep.subr.mxu0 0.0
        %335 = vmatpush1.msra.mxu0 0.0
        %336 = vmatprep.subr.mxu0 0.0
        %337 = vmatpush1.msra.mxu0 0.0
        %338 = vmatprep.subr.mxu0 0.0
        %339 = vmatpush1.msra.mxu0 0.0
        %340 = vmatprep.subr.mxu0 0.0
        %341 = vmatpush1.msra.mxu0 0.0
        %342 = vmatprep.subr.mxu0 0.0
        %343 = vmatpush1.msra.mxu0 0.0
        %344 = vmatprep.subr.mxu0 0.0
        %345 = vmatpush1.msra.mxu0 0.0
        %346 = vmatprep.subr.mxu0 0.0
        %347 = vmatpush1.msra.mxu0 0.0
        %348 = vmatprep.subr.mxu0 0.0
        %349 = vmatpush1.msra.mxu0 0.0
        %350 = vmatprep.subr.mxu0 0.0
        %351 = vmatpush1.msra.mxu0 0.0
        %352 = vmatprep.subr.mxu0 0.0
        %353 = vmatpush1.msra.mxu0 0.0
        %354 = vmatprep.subr.mxu0 0.0
        %355 = vmatpush1.msra.mxu0 0.0
        %356 = vmatprep.subr.mxu0 0.0
        %357 = vmatpush1.msra.mxu0 0.0
        %358 = vmatprep.subr.mxu0 0.0
        %359 = vmatpush1.msra.mxu0 0.0
        %360 = vmatprep.subr.mxu0 0.0
        %361 = vmatpush1.msra.mxu0 0.0
        %362 = vmatprep.subr.mxu0 0.0
        %363 = vmatpush1.msra.mxu0 0.0
        %364 = vmatprep.subr.mxu0 0.0
        %365 = vmatpush1.msra.mxu0 0.0
        %366 = vmatprep.subr.mxu0 0.0
        %367 = vmatpush1.msra.mxu0 0.0
        %368 = vmatprep.subr.mxu0 0.0
        %369 = vmatpush1.msra.mxu0 0.0
        %370 = vmatprep.subr.mxu0 0.0
        %371 = vmatpush1.msra.mxu0 0.0
        %372 = vmatprep.subr.mxu0 0.0
        %373 = vmatpush1.msra.mxu0 0.0
        %374 = vmatprep.subr.mxu0 0.0
        %375 = vmatpush1.msra.mxu0 0.0
        %376 = vmatprep.mubr.f32.mxu0 0.0
        %377 = vmatmul.mubr.f32.gmra.mrb[0].mxu0 %v310
        %v378 = vpop.f32.mrb[0].mxu0
        %v379 = vadd.f32 %v306, %v378
        %v380 = vpop.f32.mrb[0].mxu0
        %381 = vdwg.mxu0
        %v382 = vld [vmem:[%s276] sm:$0x1]
        %v384 = vlaneseq
        %v385 = vshrl.u32 %v384, 7
        %v386 = vsub.s32 0, %v385
        %v387 = vrot.slane %v382, %v386
        %v389 = vmul.f32 %v300, %v387
        %v390 = vadd.f32 %v379, %v389
        %391 = vst.msk [vmem:[%s270] sm:$0xff] %vm308, %v390
        %s392 = sand.u32 %s148, 1
        %s393 = scalar_lea.sflag [#allocation4], %s392
        %s394 = sand.u32 %s148, 1
        %s395 = smul.addr %s394, 8
        %s396 = scalar_lea.vmem [#allocation7], %s395
        // Predicated region
        $region45: #{tpu_custom_call.1} parent=35 // pred_check
          %p397 = pneg %p158
        $region46: #{tpu_custom_call.1} parent=35 // pred_check_branch
          %399 = sbr.rel (%p397) target = $region48
        $region47: #{tpu_custom_call.1} parent=35 // pred_region
          %s401 = ssub.s32 128, 128
          %402 = vsyncadd %s393, %s401
          %s403 = sadd.s32 %s27, %s26
          %s404 = smul.addr %s403, 128
          %s405 = scalar_lea.hbm %s4, %s404
          %s407 = sshll.u32 %s396, 4
          %s408 = int_to_ptr.vmem [resolvable:$true] %s407
          %410 = dma.vmem_to_hbm [thread:$0]  %s408, 128, %s405, %s393
        $region48: #{tpu_custom_call.1} parent=35 // pred_fallthru
          _
      $region36: #{tpu_custom_call.1} parent=5 // pred_fallthru
        _
      %p411 = scmp.le.s32.totalorder 2, %s17
      // Predicated region
      $region49: #{tpu_custom_call.1} parent=5 // pred_check
        %p412 = pneg %p411
      $region50: #{tpu_custom_call.1} parent=5 // pred_check_branch
        %414 = sbr.rel (%p412) target = $region52
      $region51: #{tpu_custom_call.1} parent=5 // pred_region
        %s415 = ssub.s32 %s17, 2
        // Predicated region
        $region53: #{tpu_custom_call.1} parent=51 // pred_check
          %p416 = pneg %p164
        $region54: #{tpu_custom_call.1} parent=51 // pred_check_branch
          %418 = sbr.rel (%p416) target = $region56
        $region55: #{tpu_custom_call.1} parent=51 // pred_region
          %s419 = sand.u32 %s149, 1
          %s420 = scalar_lea.sflag [#allocation4], %s419
          %s421 = sand.u32 %s149, 1
          %s422 = smul.addr %s421, 8
          %s423 = scalar_lea.vmem [#allocation7], %s422
          %424 = dma.done %s420, 128
        $region56: #{tpu_custom_call.1} parent=51 // pred_fallthru
          _
      $region52: #{tpu_custom_call.1} parent=5 // pred_fallthru
        _
    $region6: #{tpu_custom_call.1} parent=1 // loop_footer
      %s21 = sadd.s32 1, %s17
    $region7: #{tpu_custom_call.1} parent=1 // loop_footer_branch
      %16 = sbr.rel target = $region3
    $region8: #{tpu_custom_call.1} parent=1 // loop_exit
      _
    %425 = vsyncpa [#allocation3], 1
    %s426 = scalar_lea.sflag [#allocation3], 1
    %427 = vsyncpa %s426, 1
    %428 = vsyncpa [#allocation6], 1
    %429 = vsyncpa [#allocation4], 1
    %s430 = scalar_lea.sflag [#allocation4], 1
    %431 = vsyncpa %s430, 1

// kernel: tpu_custom_call.1
$region0: #{tpu_custom_call.1}
  #allocation0 [shape = 'u32[]', space=smem, size = 0x4, offset = 0x4, fixed_abs, tag = 'smem constant byte address 0x4 - core index']
  #allocation1 [shape = 'u32[144,128]{1,0:T(1,128)}', space=vmem, size = 0x12000, scoped, tag = 'internal scratch']
  %s0 = inlined_call_operand.hbm [shape: f32[32,32], index: 0, kind: input, shape index: {}]
  %s1 = inlined_call_operand.hbm [shape: f32[32,32], index: 1, kind: input, shape index: {}]
  %s2 = inlined_call_operand.vmem [shape: f32[1,32], index: 2, kind: input, shape index: {}]
  %s3 = inlined_call_operand.vmem [shape: f32[1,32], index: 3, kind: input, shape index: {}]
  %s4 = inlined_call_operand.hbm [shape: f32[32,32], index: 4, kind: output, shape index: {}]
  %s5 = sld [smem:[#allocation0]]
  $region57: #{tpu_custom_call.1} parent=0
    _
  %s7 = ssub.s32 1, %s5
  %s8 = scalar_select 0, %s7, %s5
  $region1: #{tpu_custom_call.1} parent=0
    #allocation2 [shape = 'u8[8192]{0}', space=vmem, size = 0x2000, scoped, tag = 'input window, operand 0']
    #allocation3 [shape = 's32[2]{0}', space=sflag, size = 0x8, scoped, tag = 'scoped memory for tpu_custom_call.1']
    #allocation4 [shape = 's32[2]{0}', space=sflag, size = 0x8, scoped, tag = 'scoped memory for tpu_custom_call.1']
    #allocation5 [shape = 'u8[16384]{0}', space=vmem, size = 0x4000, scoped, tag = 'input window, operand 1, single buffered']
    #allocation6 [shape = 's32[1]{0}', space=sflag, size = 0x4, scoped, tag = 'scoped memory for tpu_custom_call.1']
    #allocation7 [shape = 'u8[8192]{0}', space=vmem, size = 0x2000, scoped, tag = 'output window, operand 0']
    %9 = vsyncpa [#allocation3], 0
    %s10 = scalar_lea.sflag [#allocation3], 1
    %11 = vsyncpa %s10, 0
    %12 = vsyncpa [#allocation6], 0
    %13 = vsyncpa [#allocation4], 0
    %s14 = scalar_lea.sflag [#allocation4], 1
    %15 = vsyncpa %s14, 0
    loop: start=0, step=1, limit=6
    $region2: #{tpu_custom_call.1} parent=1 // loop_pre_header
      _
    $region3: #{tpu_custom_call.1} parent=1 // loop_header
      %s17 = sphi 0, %s21
      %p18 = scmp.ge.s32.totalorder %s17, 6
      %s24 = sphi 0, %s36
      %s25 = sphi 0, %s32
      %s26 = sphi 0, %s24
      %s27 = sphi 0, %s25
      %s28 = sphi 0, %s26
      %s29 = sphi 0, %s27
      %s39 = sphi 0, %s41
      %s42 = sphi 0, %s39
      %s43 = sphi 0, %s42
      %s59 = sphi 0, %s43
      %s65 = sphi 0, %s67
      %s68 = sphi 0, %s65
      %s69 = sphi 0, %s68
      %s85 = sphi 0, %s69
      %s91 = sphi 0, %s93
      %s94 = sphi 0, %s91
      %s95 = sphi 0, %s94
      %s111 = sphi 0, %s95
      %s117 = sphi 0, %s119
      %s120 = sphi 0, %s117
      %s121 = sphi 0, %s120
      %s137 = sphi 0, %s121
      %s145 = sphi 0, %s147
      %s148 = sphi 0, %s145
      %s149 = sphi 0, %s148
      %s165 = sphi 0, %s149
    $region4: #{tpu_custom_call.1} parent=1 // loop_header_branch
      %20 = sbr.rel (%p18) target = $region8
    $region5: #{tpu_custom_call.1} parent=1 // loop_body
      %s22 = ssub.s32 %s17, 1
      %s23 = ssub.s32 %s17, 2
      %s30 = sadd.s32 1, %s25
      %p31 = scmp.ge.s32.totalorder %s30, 1
      %s32 = scalar_select %p31, 0, %s30
      %s33 = sadd.s32 1, %s24
      %s34 = scalar_select %p31, %s33, %s24
      %p35 = scmp.ge.s32.totalorder %s34, 4
      %s36 = scalar_select %p35, 0, %s34
      %s37 = ssub.s32 %s24, %s36
      %p38 = scmp.eq.s32.totalorder %s37, 0
      %s40 = sadd.s32 %s39, 1
      %s41 = scalar_select %p38, %s39, %s40
      %p44 = pneg %p38
      %p45 = scmp.eq.s32.totalorder %s17, 3
      %p46 = por %p44, %p45
      %p47 = scmp.ne.s32.totalorder %s39, %s42
      %p48 = scmp.eq.s32.totalorder %s17, 0
      %p49 = por %p47, %p48
      %p50 = scmp.ne.s32.totalorder %s39, %s42
      %p51 = scmp.eq.s32.totalorder %s22, 3
      %p52 = por %p50, %p51
      %p53 = scmp.ne.s32.totalorder %s42, %s43
      %p54 = scmp.eq.s32.totalorder %s22, 0
      %p55 = por %p53, %p54
      %p56 = scmp.ne.s32.totalorder %s42, %s43
      %p57 = scmp.eq.s32.totalorder %s23, 3
      %p58 = por %p56, %p57
      %p60 = scmp.ne.s32.totalorder %s43, %s59
      %p61 = scmp.eq.s32.totalorder %s23, 0
      %p62 = por %p60, %p61
      %s63 = ssub.s32 %s25, %s32
      %p64 = scmp.eq.s32.totalorder %s63, 0
      %s66 = sadd.s32 %s65, 1
      %s67 = scalar_select %p64, %s65, %s66
      %p70 = pneg %p64
      %p71 = scmp.eq.s32.totalorder %s17, 3
      %p72 = por %p70, %p71
      %p73 = scmp.ne.s32.totalorder %s65, %s68
      %p74 = scmp.eq.s32.totalorder %s17, 0
      %p75 = por %p73, %p74
      %p76 = scmp.ne.s32.totalorder %s65, %s68
      %p77 = scmp.eq.s32.totalorder %s22, 3
      %p78 = por %p76, %p77
      %p79 = scmp.ne.s32.totalorder %s68, %s69
      %p80 = scmp.eq.s32.totalorder %s22, 0
      %p81 = por %p79, %p80
      %p82 = scmp.ne.s32.totalorder %s68, %s69
      %p83 = scmp.eq.s32.totalorder %s23, 3
      %p84 = por %p82, %p83
      %p86 = scmp.ne.s32.totalorder %s69, %s85
      %p87 = scmp.eq.s32.totalorder %s23, 0
      %p88 = por %p86, %p87
      %s89 = ssub.s32 %s25, %s32
      %p90 = scmp.eq.s32.totalorder %s89, 0
      %s92 = sadd.s32 %s91, 1
      %s93 = scalar_select %p90, %s91, %s92
      %p96 = pneg %p90
      %p97 = scmp.eq.s32.totalorder %s17, 3
      %p98 = por %p96, %p97
      %p99 = scmp.ne.s32.totalorder %s91, %s94
      %p100 = scmp.eq.s32.totalorder %s17, 0
      %p101 = por %p99, %p100
      %p102 = scmp.ne.s32.totalorder %s91, %s94
      %p103 = scmp.eq.s32.totalorder %s22, 3
      %p104 = por %p102, %p103
      %p105 = scmp.ne.s32.totalorder %s94, %s95
      %p106 = scmp.eq.s32.totalorder %s22, 0
      %p107 = por %p105, %p106
      %p108 = scmp.ne.s32.totalorder %s94, %s95
      %p109 = scmp.eq.s32.totalorder %s23, 3
      %p110 = por %p108, %p109
      %p112 = scmp.ne.s32.totalorder %s95, %s111
      %p113 = scmp.eq.s32.totalorder %s23, 0
      %p114 = por %p112, %p113
      %s115 = ssub.s32 %s25, %s32
      %p116 = scmp.eq.s32.totalorder %s115, 0
      %s118 = sadd.s32 %s117, 1
      %s119 = scalar_select %p116, %s117, %s118
      %p122 = pneg %p116
      %p123 = scmp.eq.s32.totalorder %s17, 3
      %p124 = por %p122, %p123
      %p125 = scmp.ne.s32.totalorder %s117, %s120
      %p126 = scmp.eq.s32.totalorder %s17, 0
      %p127 = por %p125, %p126
      %p128 = scmp.ne.s32.totalorder %s117, %s120
      %p129 = scmp.eq.s32.totalorder %s22, 3
      %p130 = por %p128, %p129
      %p131 = scmp.ne.s32.totalorder %s120, %s121
      %p132 = scmp.eq.s32.totalorder %s22, 0
      %p133 = por %p131, %p132
      %p134 = scmp.ne.s32.totalorder %s120, %s121
      %p135 = scmp.eq.s32.totalorder %s23, 3
      %p136 = por %p134, %p135
      %p138 = scmp.ne.s32.totalorder %s121, %s137
      %p139 = scmp.eq.s32.totalorder %s23, 0
      %p140 = por %p138, %p139
      %s141 = ssub.s32 %s24, %s36
      %s142 = ssub.s32 %s25, %s32
      %s143 = sor.u32 %s141, %s142
      %p144 = scmp.eq.s32.totalorder %s143, 0
      %s146 = sadd.s32 %s145, 1
      %s147 = scalar_select %p144, %s145, %s146
      %p150 = pneg %p144
      %p151 = scmp.eq.s32.totalorder %s17, 3
      %p152 = por %p150, %p151
      %p153 = scmp.ne.s32.totalorder %s145, %s148
      %p154 = scmp.eq.s32.totalorder %s17, 0
      %p155 = por %p153, %p154
      %p156 = scmp.ne.s32.totalorder %s145, %s148
      %p157 = scmp.eq.s32.totalorder %s22, 3
      %p158 = por %p156, %p157
      %p159 = scmp.ne.s32.totalorder %s148, %s149
      %p160 = scmp.eq.s32.totalorder %s22, 0
      %p161 = por %p159, %p160
      %p162 = scmp.ne.s32.totalorder %s148, %s149
      %p163 = scmp.eq.s32.totalorder %s23, 3
      %p164 = por %p162, %p163
      %p166 = scmp.ne.s32.totalorder %s149, %s165
      %p167 = scmp.eq.s32.totalorder %s23, 0
      %p168 = por %p166, %p167
      %p169 = scmp.le.s32.totalorder 1, %s17
      %p170 = scmp.lt.s32.totalorder %s17, 5
      %p171 = pnand %p169, %p170
      %p172 = pneg %p171
      // Predicated region
      $region9: #{tpu_custom_call.1} parent=5 // pred_check
        _
      $region10: #{tpu_custom_call.1} parent=5 // pred_check_branch
        %174 = sbr.rel (%p171) target = $region12
      $region11: #{tpu_custom_call.1} parent=5 // pred_region
        %s175 = ssub.s32 %s17, 1
        // Predicated region
        $region13: #{tpu_custom_call.1} parent=11 // pred_check
          %p176 = pneg %p81
        $region14: #{tpu_custom_call.1} parent=11 // pred_check_branch
          %178 = sbr.rel (%p176) target = $region16
        $region15: #{tpu_custom_call.1} parent=11 // pred_region
          %s180 = ssub.s32 512, 512
          %181 = vsyncadd [#allocation6], %s180
          %s182 = smul.addr %s27, 128
          %s183 = scalar_lea.hbm %s1, %s182
          %s184 = sshll.u32 [#allocation5], 4
          %s185 = int_to_ptr.vmem [resolvable:$true] %s184
          %190 = dma.hbm_to_vmem [thread:$0]  %s183, 512, %s185, [#allocation6], 128, 128, 8
        $region16: #{tpu_custom_call.1} parent=11 // pred_fallthru
          _
        // Predicated region
        $region17: #{tpu_custom_call.1} parent=11 // pred_check
          %p191 = pneg %p107
        $region18: #{tpu_custom_call.1} parent=11 // pred_check_branch
          %193 = sbr.rel (%p191) target = $region20
        $region19: #{tpu_custom_call.1} parent=11 // pred_region
          %p194 = scmp.lt.s32.totalorder %s27, 0
          %s195 = scalar_select %p194, %s27, 0
          %s196 = scalar_lea.vmem %s2, %s195
        $region20: #{tpu_custom_call.1} parent=11 // pred_fallthru
          _
        // Predicated region
        $region21: #{tpu_custom_call.1} parent=11 // pred_check
          %p197 = pneg %p133
        $region22: #{tpu_custom_call.1} parent=11 // pred_check_branch
          %199 = sbr.rel (%p197) target = $region24
        $region23: #{tpu_custom_call.1} parent=11 // pred_region
          %p200 = scmp.lt.s32.totalorder %s27, 0
          %s201 = scalar_select %p200, %s27, 0
          %s202 = scalar_lea.vmem %s3, %s201
        $region24: #{tpu_custom_call.1} parent=11 // pred_fallthru
          _
      $region12: #{tpu_custom_call.1} parent=5 // pred_fallthru
        _
      %p203 = scmp.lt.s32.totalorder %s17, 4
      // Predicated region
      $region25: #{tpu_custom_call.1} parent=5 // pred_check
        %p204 = pneg %p203
      $region26: #{tpu_custom_call.1} parent=5 // pred_check_branch
        %206 = sbr.rel (%p204) target = $region28
      $region27: #{tpu_custom_call.1} parent=5 // pred_region
        // Predicated region
        $region29: #{tpu_custom_call.1} parent=27 // pred_check
          %p207 = pneg %p49
        $region30: #{tpu_custom_call.1} parent=27 // pred_check_branch
          %209 = sbr.rel (%p207) target = $region32
        $region31: #{tpu_custom_call.1} parent=27 // pred_region
          %s210 = sand.u32 %s39, 1
          %s211 = scalar_lea.sflag [#allocation3], %s210
          %s212 = sand.u32 %s39, 1
          %s213 = smul.addr %s212, 8
          %s214 = scalar_lea.vmem [#allocation2], %s213
          %s216 = ssub.s32 128, 128
          %217 = vsyncadd %s211, %s216
          %s218 = smul.addr %s24, 128
          %s219 = scalar_lea.hbm %s0, %s218
          %s221 = sshll.u32 %s214, 4
          %s222 = int_to_ptr.vmem [resolvable:$true] %s221
          %224 = dma.hbm_to_vmem [thread:$0]  %s219, 128, %s222, %s211
        $region32: #{tpu_custom_call.1} parent=27 // pred_fallthru
          _
      $region28: #{tpu_custom_call.1} parent=5 // pred_fallthru
        _
      %p225 = scmp.le.s32.totalorder 1, %s17
      %p226 = scmp.lt.s32.totalorder %s17, 5
      %p227 = pnand %p225, %p226
      %p228 = pneg %p227
      // Predicated region
      $region33: #{tpu_custom_call.1} parent=5 // pred_check
        _
      $region34: #{tpu_custom_call.1} parent=5 // pred_check_branch
        %230 = sbr.rel (%p227) target = $region36
      $region35: #{tpu_custom_call.1} parent=5 // pred_region
        %s231 = ssub.s32 %s17, 1
        %s232 = sand.u32 %s42, 1
        %s233 = scalar_lea.sflag [#allocation3], %s232
        %s234 = sand.u32 %s42, 1
        %s235 = smul.addr %s234, 8
        %s236 = scalar_lea.vmem [#allocation2], %s235
        // Predicated region
        $region37: #{tpu_custom_call.1} parent=35 // pred_check
          %p237 = pneg %p55
        $region38: #{tpu_custom_call.1} parent=35 // pred_check_branch
          %239 = sbr.rel (%p237) target = $region40
        $region39: #{tpu_custom_call.1} parent=35 // pred_region
          %240 = dma.done %s233, 128
        $region40: #{tpu_custom_call.1} parent=35 // pred_fallthru
          _
        // Predicated region
        $region41: #{tpu_custom_call.1} parent=35 // pred_check
          %p241 = pneg %p81
        $region42: #{tpu_custom_call.1} parent=35 // pred_check_branch
          %243 = sbr.rel (%p241) target = $region44
        $region43: #{tpu_custom_call.1} parent=35 // pred_region
          %244 = dma.done [#allocation6], 512
        $region44: #{tpu_custom_call.1} parent=35 // pred_fallthru
          _
        %s245 = sand.u32 %s42, 1
        %s246 = scalar_lea.sflag [#allocation3], %s245
        %s247 = sand.u32 %s42, 1
        %s248 = smul.addr %s247, 8
        %s249 = scalar_lea.vmem [#allocation2], %s248
        %p250 = pneg %p55
        %p251 = pneg %p52
        %p252 = pneg %p81
        %p253 = pneg %p78
        %p254 = scmp.lt.s32.totalorder %s27, 0
        %s255 = scalar_select %p254, %s27, 0
        %s256 = scalar_lea.vmem %s2, %s255
        %p257 = pneg %p107
        %p258 = pneg %p104
        %p259 = scmp.lt.s32.totalorder %s27, 0
        %s260 = scalar_select %p259, %s27, 0
        %s261 = scalar_lea.vmem %s3, %s260
        %p262 = pneg %p133
        %p263 = pneg %p130
        %p264 = pneg %p161
        %p265 = pneg %p158
        %s266 = sand.u32 %s148, 1
        %s267 = scalar_lea.sflag [#allocation4], %s266
        %s268 = sand.u32 %s148, 1
        %s269 = smul.addr %s268, 8
        %s270 = scalar_lea.vmem [#allocation7], %s269
        %p271 = scmp.lt.s32.totalorder %s27, 0
        %s272 = scalar_select %p271, %s27, 0
        %s273 = scalar_lea.vmem %s2, %s272
        %p274 = scmp.lt.s32.totalorder %s27, 0
        %s275 = scalar_select %p274, %s27, 0
        %s276 = scalar_lea.vmem %s3, %s275
        %v277 = vld [vmem:[%s236] sm:$0xff]
        %v278 = vld [vmem:[#allocation5] sm:$0xff]
        %v279 = vld [vmem:[#allocation5 + $0x8] sm:$0xff]
        %v280 = vld [vmem:[#allocation5 + $0x10] sm:$0xff]
        %v281 = vld [vmem:[#allocation5 + $0x18] sm:$0xff]
        %s282 = smul.u32 %s26, 8
        %v283 = vlaneseq
        %v284 = vshrl.u32 %v283, 7
        %v285 = vstv %s282
        %v286 = vadd.s32 %v285, %v284
        %vm287 = vcmp.lt.s32.totalorder %v286, 0
        %v288 = vsub.s32 0, %v286
        %v289 = vsel %vm287, %v288, %v286
        %v290 = vshrl.u32 %v289, 4
        %v291 = vand.u32 %v289, 15
        %v292 = vsub.s32 0, %v291
        %v293 = vsel %vm287, %v292, %v291
        %vm294 = vcmp.ne.s32.totalorder %v293, 0
        %vm295 = vcmp.lt.s32.totalorder %v293, 0
        %vm296 = vmand %vm295, %vm294
        %v297 = vadd.s32 %v293, 16
        %v298 = vsel %vm296, %v297, %v293
        %v299 = vcvt.s32.f32 %v298
        %v300 = vmul.f32 %v299, 0.0625
        %v301 = vld [vmem:[%s273] sm:$0x1]
        %v303 = vlaneseq
        %v304 = vshrl.u32 %v303, 7
        %v305 = vsub.s32 0, %v304
        %v306 = vrot.slane %v301, %v305
        %vm308 = vcmask 261120
        %v310 = vsel %vm308, %v277, 0
        %312 = vmatprep.subr.mxu0 0.0
        %313 = vmatpush1.msra.mxu0 %v278
        %314 = vmatprep.subr.mxu0 0.0
        %315 = vmatpush1.msra.mxu0 %v279
        %316 = vmatprep.subr.mxu0 0.0
        %317 = vmatpush1.msra.mxu0 %v280
        %318 = vmatprep.subr.mxu0 0.0
        %319 = vmatpush1.msra.mxu0 %v281
        %320 = vmatprep.subr.mxu0 0.0
        %321 = vmatpush1.msra.mxu0 0.0
        %322 = vmatprep.subr.mxu0 0.0
        %323 = vmatpush1.msra.mxu0 0.0
        %324 = vmatprep.subr.mxu0 0.0
        %325 = vmatpush1.msra.mxu0 0.0
        %326 = vmatprep.subr.mxu0 0.0
        %327 = vmatpush1.msra.mxu0 0.0
        %328 = vmatprep.subr.mxu0 0.0
        %329 = vmatpush1.msra.mxu0 0.0
        %330 = vmatprep.subr.mxu0 0.0
        %331 = vmatpush1.msra.mxu0 0.0
        %332 = vmatprep.subr.mxu0 0.0
        %333 = vmatpush1.msra.mxu0 0.0
        %334 = vmatprep.subr.mxu0 0.0
        %335 = vmatpush1.msra.mxu0 0.0
        %336 = vmatprep.subr.mxu0 0.0
        %337 = vmatpush1.msra.mxu0 0.0
        %338 = vmatprep.subr.mxu0 0.0
        %339 = vmatpush1.msra.mxu0 0.0
        %340 = vmatprep.subr.mxu0 0.0
        %341 = vmatpush1.msra.mxu0 0.0
        %342 = vmatprep.subr.mxu0 0.0
        %343 = vmatpush1.msra.mxu0 0.0
        %344 = vmatprep.subr.mxu0 0.0
        %345 = vmatpush1.msra.mxu0 0.0
        %346 = vmatprep.subr.mxu0 0.0
        %347 = vmatpush1.msra.mxu0 0.0
        %348 = vmatprep.subr.mxu0 0.0
        %349 = vmatpush1.msra.mxu0 0.0
        %350 = vmatprep.subr.mxu0 0.0
        %351 = vmatpush1.msra.mxu0 0.0
        %352 = vmatprep.subr.mxu0 0.0
        %353 = vmatpush1.msra.mxu0 0.0
        %354 = vmatprep.subr.mxu0 0.0
        %355 = vmatpush1.msra.mxu0 0.0
        %356 = vmatprep.subr.mxu0 0.0
        %357 = vmatpush1.msra.mxu0 0.0
        %358 = vmatprep.subr.mxu0 0.0
        %359 = vmatpush1.msra.mxu0 0.0
        %360 = vmatprep.subr.mxu0 0.0
        %361 = vmatpush1.msra.mxu0 0.0
        %362 = vmatprep.subr.mxu0 0.0
        %363 = vmatpush1.msra.mxu0 0.0
        %364 = vmatprep.subr.mxu0 0.0
        %365 = vmatpush1.msra.mxu0 0.0
        %366 = vmatprep.subr.mxu0 0.0
        %367 = vmatpush1.msra.mxu0 0.0
        %368 = vmatprep.subr.mxu0 0.0
        %369 = vmatpush1.msra.mxu0 0.0
        %370 = vmatprep.subr.mxu0 0.0
        %371 = vmatpush1.msra.mxu0 0.0
        %372 = vmatprep.subr.mxu0 0.0
        %373 = vmatpush1.msra.mxu0 0.0
        %374 = vmatprep.subr.mxu0 0.0
        %375 = vmatpush1.msra.mxu0 0.0
        %376 = vmatprep.mubr.f32.mxu0 0.0
        %377 = vmatmul.mubr.f32.gmra.mrb[0].mxu0 %v310
        %v378 = vpop.f32.mrb[0].mxu0
        %v379 = vadd.f32 %v306, %v378
        %v380 = vpop.f32.mrb[0].mxu0
        %381 = vdwg.mxu0
        %v382 = vld [vmem:[%s276] sm:$0x1]
        %v384 = vlaneseq
        %v385 = vshrl.u32 %v384, 7
        %v386 = vsub.s32 0, %v385
        %v387 = vrot.slane %v382, %v386
        %v389 = vmul.f32 %v300, %v387
        %v390 = vadd.f32 %v379, %v389
        %391 = vst.msk [vmem:[%s270] sm:$0xff] %vm308, %v390
        %s392 = sand.u32 %s148, 1
        %s393 = scalar_lea.sflag [#allocation4], %s392
        %s394 = sand.u32 %s148, 1
        %s395 = smul.addr %s394, 8
        %s396 = scalar_lea.vmem [#allocation7], %s395
        // Predicated region
        $region45: #{tpu_custom_call.1} parent=35 // pred_check
          %p397 = pneg %p158
        $region46: #{tpu_custom_call.1} parent=35 // pred_check_branch
          %399 = sbr.rel (%p397) target = $region48
        $region47: #{tpu_custom_call.1} parent=35 // pred_region
          %s401 = ssub.s32 128, 128
          %402 = vsyncadd %s393, %s401
          %s403 = sadd.s32 %s27, %s26
          %s404 = smul.addr %s403, 128
          %s405 = scalar_lea.hbm %s4, %s404
          %s407 = sshll.u32 %s396, 4
          %s408 = int_to_ptr.vmem [resolvable:$true] %s407
          %410 = dma.vmem_to_hbm [thread:$0]  %s408, 128, %s405, %s393
        $region48: #{tpu_custom_call.1} parent=35 // pred_fallthru
          _
      $region36: #{tpu_custom_call.1} parent=5 // pred_fallthru
        _
      %p411 = scmp.le.s32.totalorder 2, %s17
      // Predicated region
      $region49: #{tpu_custom_call.1} parent=5 // pred_check
        %p412 = pneg %p411
      $region50: #{tpu_custom_call.1} parent=5 // pred_check_branch
        %414 = sbr.rel (%p412) target = $region52
      $region51: #{tpu_custom_call.1} parent=5 // pred_region
        %s415 = ssub.s32 %s17, 2
        // Predicated region
        $region53: #{tpu_custom_call.1} parent=51 // pred_check
          %p416 = pneg %p164
        $region54: #{tpu_custom_call.1} parent=51 // pred_check_branch
          %418 = sbr.rel (%p416) target = $region56
        $region55: #{tpu_custom_call.1} parent=51 // pred_region
          %s419 = sand.u32 %s149, 1
          %s420 = scalar_lea.sflag [#allocation4], %s419
          %s421 = sand.u32 %s149, 1
          %s422 = smul.addr %s421, 8
          %s423 = scalar_lea.vmem [#allocation7], %s422
          %424 = dma.done %s420, 128
        $region56: #{tpu_custom_call.1} parent=51 // pred_fallthru
          _
      $region52: #{tpu_custom_call.1} parent=5 // pred_fallthru
        _
    $region6: #{tpu_custom_call.1} parent=1 // loop_footer
      %s21 = sadd.s32 1, %s17
    $region7: #{tpu_custom_call.1} parent=1 // loop_footer_branch
      %16 = sbr.rel target = $region3
    $region8: #{tpu_custom_call.1} parent=1 // loop_exit
      _
    %425 = vsyncpa [#allocation3], 1
    %s426 = scalar_lea.sflag [#allocation3], 1
    %427 = vsyncpa %s426, 1
    %428 = vsyncpa [#allocation6], 1
    %429 = vsyncpa [#allocation4], 1
    %s430 = scalar_lea.sflag [#allocation4], 1
    %431 = vsyncpa %s430, 1

</llo_original>
